<compile_context>
chip_gen: v7x
topology: tpu7x:2x2x1
jax: 0.10.0
libtpu: 0.0.40
codegen_flags: <defaults>
</compile_context>

<pallas_src>
import functools
import math

import jax
import jax.numpy as jnp
from jax.experimental import pallas as pl
from jax.experimental.pallas import tpu as pltpu


# ---------------------------------------------------------------------------
# Kernels
# ---------------------------------------------------------------------------
def _attn_full_kernel(q_ref, k_ref, v_ref, o_ref, *, scale, compute_dtype):
    """One grid step = (n_tile, h_tile) heads, full softmax over the sequence."""
    nt, ht, ch, t = q_ref.shape
    b = nt * ht
    # scale (== ch**-0.5 folded once into q) is applied in the input dtype,
    # then operands are cast to the MXU compute dtype (bf16 for f32 inputs).
    q = (q_ref[...] * scale).reshape(b, ch, t).astype(compute_dtype)
    k = k_ref[...].reshape(b, ch, t).astype(compute_dtype)
    v = v_ref[...].reshape(b, ch, t).astype(compute_dtype)

    # w[b, t, s] = sum_c q[b, c, t] * k[b, c, s]   (f32 accumulation on MXU)
    w = jax.lax.dot_general(
        q, k, (((1,), (1,)), ((0,), (0,))),
        preferred_element_type=jnp.float32)                       # (b, T, S) f32
    w = w - jnp.max(w, axis=-1, keepdims=True)
    p = jnp.exp(w)
    denom = jnp.sum(p, axis=-1, keepdims=True)                    # (b, T, 1)

    # Deferred normalization: PV with the un-normalized exp-scores, then divide
    # the (b, C, T) result (O(C*T) VPU) instead of the (T, T) weights (O(T^2)).
    # a[b, c, t] = sum_s v[b, c, s] * p[b, t, s]  -> lane-dense in T, no output
    # transpose needed.
    a = jax.lax.dot_general(
        v, p.astype(compute_dtype), (((2,), (2,)), ((0,), (0,))),
        preferred_element_type=jnp.float32)                       # (b, C, T) f32
    inv = pl.reciprocal(denom, approx=True)                       # (b, T, 1)
    out = a * jnp.swapaxes(inv, 1, 2)                             # (b, C, T)
    o_ref[...] = out.reshape(nt, ht, ch, t).astype(o_ref.dtype)


def _attn_flash_kernel(q_ref, k_ref, v_ref, o_ref,
                       q_sc, m_sc, l_sc, acc_sc, *, scale, compute_dtype):
    """Online softmax over key tiles; grid = (n_blk, h_blk, q_tiles, kv_tiles)."""
    si = pl.program_id(3)
    nt, ht, ch, tq = q_ref.shape
    b = nt * ht

    @pl.when(si == 0)
    def _():
        # Scaled + cast q is hoisted out of the kv loop (block is resident
        # across it anyway, but the multiply/cast would otherwise be redone).
        q_sc[...] = (q_ref[...] * scale).reshape(b, ch, tq).astype(compute_dtype)
        m_sc[...] = jnp.full_like(m_sc, -jnp.inf)
        l_sc[...] = jnp.zeros_like(l_sc)
        acc_sc[...] = jnp.zeros_like(acc_sc)

    ts = k_ref.shape[-1]
    k = k_ref[...].reshape(b, ch, ts).astype(compute_dtype)
    v = v_ref[...].reshape(b, ch, ts).astype(compute_dtype)

    s = jax.lax.dot_general(
        q_sc[...], k, (((1,), (1,)), ((0,), (0,))),
        preferred_element_type=jnp.float32)                       # (b, TQ, TS)

    m_prev = m_sc[...]                                            # (b, TQ, 1)
    m_new = jnp.maximum(m_prev, jnp.max(s, axis=-1, keepdims=True))
    alpha = jnp.exp(m_prev - m_new)                               # (b, TQ, 1)
    p = jnp.exp(s - m_new)                                        # (b, TQ, TS)
    l_sc[...] = alpha * l_sc[...] + jnp.sum(p, axis=-1, keepdims=True)

    # pv[b, c, t] = sum_s v[b, c, s] * p[b, t, s]  -> accumulator lane-dense
    # in TQ; no output transpose in the epilogue.
    pv = jax.lax.dot_general(
        v, p.astype(compute_dtype), (((2,), (2,)), ((0,), (0,))),
        preferred_element_type=jnp.float32)                       # (b, C, TQ)
    acc_sc[...] = jnp.swapaxes(alpha, 1, 2) * acc_sc[...] + pv
    m_sc[...] = m_new

    @pl.when(si == pl.num_programs(3) - 1)
    def _():
        inv = pl.reciprocal(l_sc[...], approx=True)               # (b, TQ, 1)
        out = acc_sc[...] * jnp.swapaxes(inv, 1, 2)               # (b, C, TQ)
        o_ref[...] = out.reshape(nt, ht, ch, tq).astype(o_ref.dtype)


# ---------------------------------------------------------------------------
# Sizing helpers (generation-aware)
# ---------------------------------------------------------------------------
_MiB = 1024 * 1024


def _vmem_capacity_bytes():
    try:
        info = pltpu.get_tpu_info()
        cap = int(getattr(info, "vmem_capacity_bytes", 0) or 0)
        if cap > 0:
            return cap
    except Exception:
        pass
    return 64 * _MiB          # conservative fallback (v7x physical VMEM)


def _divisors(n):
    return [d for d in range(1, n + 1) if n % d == 0]


def _choose_tiles(n, h, cap):
    """Pick (n_tile, h_tile) with n_tile|n, h_tile|h maximizing the product <= cap."""
    cap = max(1, int(cap))
    best = (1, 1)
    for ht in _divisors(h):
        for nt in _divisors(n):
            if nt * ht <= cap:
                cur, bst = nt * ht, best[0] * best[1]
                if cur > bst or (cur == bst and ht > best[1]):
                    best = (nt, ht)   # prefer head-packing (contiguous DMAs)
    return best


def _full_per_head_bytes(ch, length, in_it, c_it):
    # dbl-buffered q/k/v + out, bf16 casts, f32 scores + exp + cast, f32 PV.
    return (ch * length * (8 * in_it + 3 * c_it + 4)
            + length * length * (8 + c_it))


def _flash_per_head_bytes(ch, q_tile, kv_tile, in_it, c_it):
    return (2 * ch * (q_tile + 2 * kv_tile) * in_it     # dbl-buffered inputs
            + 2 * ch * q_tile * in_it                   # dbl-buffered output
            + ch * q_tile * (c_it + 4)                  # q scratch + f32 acc
            + 2 * q_tile * 4                            # m, l stats
            + 2 * ch * kv_tile * c_it                   # k/v casts
            + q_tile * kv_tile * (8 + c_it)             # s, p, p-cast
            + ch * q_tile * 4)                          # pv temp


def _compiler_params(semantics, vmem_limit_bytes):
    return pltpu.CompilerParams(dimension_semantics=semantics,
                                vmem_limit_bytes=int(vmem_limit_bytes))


def _cost_estimate(bh, ch, length, itemsize):
    return pl.CostEstimate(flops=4 * bh * length * length * ch,
                           transcendentals=bh * length * length,
                           bytes_accessed=4 * bh * ch * length * itemsize)


def _parallel_cap(cap_heads, bh):
    # Keep >= 2 blocks on the parallel (batch*head) axes: feeds v7x's second
    # TensorCore and gives the BlockSpec pipeliner something to overlap.
    if bh >= 2:
        cap_heads = min(cap_heads, max(1, bh // 2))
    return max(1, cap_heads)


# ---------------------------------------------------------------------------
# pallas_call wrappers
# ---------------------------------------------------------------------------
def _full_softmax_attention(qkv4, n_heads, ch, scale, c_dtype, budget, vlim):
    bs, _, _, length = qkv4.shape
    H = n_heads
    in_it = qkv4.dtype.itemsize
    c_it = jnp.dtype(c_dtype).itemsize
    per_head = _full_per_head_bytes(ch, length, in_it, c_it)
    cap_heads = _parallel_cap(max(1, budget // max(per_head, 1)), bs * H)
    nt, ht = _choose_tiles(bs, H, cap_heads)
    koff, voff = H // ht, 2 * (H // ht)

    kernel = functools.partial(_attn_full_kernel, scale=scale,
                               compute_dtype=c_dtype)
    return pl.pallas_call(
        kernel,
        out_shape=jax.ShapeDtypeStruct((bs, H, ch, length), qkv4.dtype),
        grid_spec=pltpu.PrefetchScalarGridSpec(
            num_scalar_prefetch=0,
            grid=(bs // nt, H // ht),
            in_specs=[
                pl.BlockSpec((nt, ht, ch, length), lambda ni, hi: (ni, hi, 0, 0)),
                pl.BlockSpec((nt, ht, ch, length),
                             lambda ni, hi: (ni, koff + hi, 0, 0)),
                pl.BlockSpec((nt, ht, ch, length),
                             lambda ni, hi: (ni, voff + hi, 0, 0)),
            ],
            out_specs=pl.BlockSpec((nt, ht, ch, length),
                                   lambda ni, hi: (ni, hi, 0, 0)),
        ),
        compiler_params=_compiler_params(("parallel", "parallel"), vlim),
        cost_estimate=_cost_estimate(bs * H, ch, length, in_it),
    )(qkv4, qkv4, qkv4)


def _flash_attention(qkv4, n_heads, ch, scale, c_dtype, q_tile, kv_tile,
                     budget, vlim):
    bs, _, _, length = qkv4.shape
    H = n_heads
    in_it = qkv4.dtype.itemsize
    c_it = jnp.dtype(c_dtype).itemsize
    per_head = _flash_per_head_bytes(ch, q_tile, kv_tile, in_it, c_it)
    cap_heads = _parallel_cap(max(1, budget // max(per_head, 1)), bs * H)
    nt, ht = _choose_tiles(bs, H, cap_heads)
    b = nt * ht
    koff, voff = H // ht, 2 * (H // ht)

    kernel = functools.partial(_attn_flash_kernel, scale=scale,
                               compute_dtype=c_dtype)
    return pl.pallas_call(
        kernel,
        out_shape=jax.ShapeDtypeStruct((bs, H, ch, length), qkv4.dtype),
        grid_spec=pltpu.PrefetchScalarGridSpec(
            num_scalar_prefetch=0,
            grid=(bs // nt, H // ht, length // q_tile, length // kv_tile),
            in_specs=[
                pl.BlockSpec((nt, ht, ch, q_tile),
                             lambda ni, hi, qi, si: (ni, hi, 0, qi)),
                pl.BlockSpec((nt, ht, ch, kv_tile),
                             lambda ni, hi, qi, si: (ni, koff + hi, 0, si)),
                pl.BlockSpec((nt, ht, ch, kv_tile),
                             lambda ni, hi, qi, si: (ni, voff + hi, 0, si)),
            ],
            out_specs=pl.BlockSpec((nt, ht, ch, q_tile),
                                   lambda ni, hi, qi, si: (ni, hi, 0, qi)),
            scratch_shapes=[
                pltpu.VMEM((b, ch, q_tile), c_dtype),      # scaled/cast q
                pltpu.VMEM((b, q_tile, 1), jnp.float32),   # running max
                pltpu.VMEM((b, q_tile, 1), jnp.float32),   # running denom
                pltpu.VMEM((b, ch, q_tile), jnp.float32),  # lane-dense acc
            ],
        ),
        compiler_params=_compiler_params(
            ("parallel", "parallel", "parallel", "arbitrary"), vlim),
        cost_estimate=_cost_estimate(bs * H, ch, length, in_it),
    )(qkv4, qkv4, qkv4)


def qkv_attention(qkv, n_heads, *, flash_min_t=None,
                  flash_q_tile=None, flash_kv_tile=None,
                  compute_dtype=jnp.bfloat16):
    """JAX/Pallas equivalent of QKVAttention.forward.

    qkv: [N, 3*H*C, T]  ->  [N, H*C, T]
    """
    bs, width, length = qkv.shape
    assert width % (3 * n_heads) == 0
    ch = width // (3 * n_heads)
    # torch applies ch**-0.25 to both q and k; applying ch**-0.5 once to q is
    # mathematically identical (f32 accumulation makes the split unnecessary).
    scale = 1.0 / math.sqrt(ch)

    # Free reshape (pure dim split, no HBM copy); q/k/v selection is done by
    # the BlockSpec index maps instead of materializing three new arrays.
    qkv4 = qkv.reshape(bs, 3 * n_heads, ch, length)

    # f32 inputs run the MXU in bf16 (f32 accumulation / f32 softmax);
    # bf16 / other inputs keep their dtype on the MXU.
    c_dtype = compute_dtype if qkv.dtype == jnp.float32 else qkv.dtype
    in_it = qkv.dtype.itemsize
    c_it = jnp.dtype(c_dtype).itemsize

    cap_bytes = _vmem_capacity_bytes()
    vlim = int(cap_bytes * 0.75)          # scoped VMEM limit (headroom kept)
    budget = int(cap_bytes * 0.55)        # sizing budget (estimate slack)

    if flash_min_t is None:
        # Full softmax avoids flash's per-step rescaling; keep it as long as
        # the (T, T) block fits the per-generation VMEM.
        flash_min_t = 1536 if cap_bytes >= 96 * _MiB else 1024

    full_per_head = _full_per_head_bytes(ch, length, in_it, c_it)
    use_flash = (length >= flash_min_t) or (full_per_head > budget)

    q_tile, kv_tile = flash_q_tile, flash_kv_tile
    if use_flash:
        if kv_tile is None:
            kv_tile = next((t for t in (512, 256, 128) if length % t == 0), None)
        if q_tile is None:
            q_cands = ((1024, 512, 256, 128) if cap_bytes >= 96 * _MiB
                       else (512, 256, 128))               # cap q_tile on v7x
            q_tile = next((t for t in q_cands if length % t == 0), None)
        if (q_tile is None or kv_tile is None
                or length % q_tile or length % kv_tile):
            # TODO(synk): pad T to a multiple of 128 (with key masking and an
            # all-masked-tile guard) so long non-128-aligned sequences can use
            # the online-softmax path instead of this full-softmax fallback.
            use_flash = False

    if use_flash:
        a4 = _flash_attention(qkv4, n_heads, ch, scale, c_dtype,
                              q_tile, kv_tile, budget, vlim)
    else:
        a4 = _full_softmax_attention(qkv4, n_heads, ch, scale, c_dtype,
                                     budget, vlim)
    return a4.reshape(bs, n_heads * ch, length)


# ---------------------------------------------------------------------------
# Pure-JAX reference (mirrors the PyTorch forward exactly, in f32)
# ---------------------------------------------------------------------------
def _reference(qkv, n_heads):
    bs, width, length = qkv.shape
    ch = width // (3 * n_heads)
    hc = n_heads * ch
    q = qkv[:, 0 * hc:1 * hc, :].reshape(bs * n_heads, ch, length)
    k = qkv[:, 1 * hc:2 * hc, :].reshape(bs * n_heads, ch, length)
    v = qkv[:, 2 * hc:3 * hc, :].reshape(bs * n_heads, ch, length)
    scale = 1.0 / math.sqrt(math.sqrt(ch))
    w = jnp.einsum('bct,bcs->bts', q * scale, k * scale)
    w = jax.nn.softmax(w.astype(jnp.float32), axis=-1).astype(w.dtype)
    a = jnp.einsum('bts,bcs->bct', w, v)
    return a.reshape(bs, -1, length)


if __name__ == "__main__":
    # Small shapes consistent with the module: N=2, H=2, C=8, T=16
    # -> qkv width = 3*H*C = 48.
    n_heads = 2
    bs, ch, T = 2, 8, 16
    width = 3 * n_heads * ch

    key = jax.random.PRNGKey(0)
    qkv = jax.random.normal(key, (bs, width, T), dtype=jnp.float32)

    out = jax.block_until_ready(qkv_attention(qkv, n_heads))
    ref = _reference(qkv, n_heads)
    assert out.shape == (bs, n_heads * ch, T)
    # Tolerance accommodates the deliberate bf16 MXU matmuls (f32 inputs) and
    # the approx (EUP) reciprocal in the softmax normalization.
    assert jnp.allclose(out, ref, atol=2e-2, rtol=2e-2), "full-softmax mismatch"

    # Also exercise the online-softmax (flash) path on a longer sequence with
    # forced 128-wide tiles so the multi-step accumulator code runs.
    T2 = 256
    qkv2 = jax.random.normal(jax.random.PRNGKey(1), (bs, width, T2),
                             dtype=jnp.float32)
    out2 = jax.block_until_ready(
        qkv_attention(qkv2, n_heads, flash_min_t=0,
                      flash_q_tile=128, flash_kv_tile=128))
    ref2 = _reference(qkv2, n_heads)
    assert out2.shape == (bs, n_heads * ch, T2)
    assert jnp.allclose(out2, ref2, atol=2e-2, rtol=2e-2), "flash mismatch"

    print("KERNEL_OK")
</pallas_src>

<mosaic_0001>
module attributes {stable_mosaic.version = 11 : i64} {
  func.func @_attn_full_kernel(%arg0: i32, %arg1: i32, %arg2: memref<1x2x8x16xf32, #tpu.memory_space<vmem>>, %arg3: memref<1x2x8x16xf32, #tpu.memory_space<vmem>>, %arg4: memref<1x2x8x16xf32, #tpu.memory_space<vmem>>, %arg5: memref<1x2x8x16xf32, #tpu.memory_space<vmem>>) attributes {dimension_semantics = [#tpu.dimension_semantics<parallel>, #tpu.dimension_semantics<parallel>], iteration_bounds = array<i64: 2, 1>, scalar_prefetch = 0 : i64, scratch_operands = 0 : i64, tpu.core_type = #tpu.core_type<tc>, window_params = [{transform_indices = @transform_0, window_bounds = array<i64: 1, 2, 8, 16>}, {transform_indices = @transform_1, window_bounds = array<i64: 1, 2, 8, 16>}, {transform_indices = @transform_2, window_bounds = array<i64: 1, 2, 8, 16>}, {transform_indices = @transform_3, window_bounds = array<i64: 1, 2, 8, 16>}]} {
    %c0 = arith.constant 0 : index
    %c0_0 = arith.constant 0 : index
    %c0_1 = arith.constant 0 : index
    %c0_2 = arith.constant 0 : index
    %0 = vector.load %arg2[%c0, %c0_0, %c0_1, %c0_2] : memref<1x2x8x16xf32, #tpu.memory_space<vmem>>, vector<1x2x8x16xf32>
    %cst = arith.constant 0.353553385 : f32
    %1 = vector.broadcast %cst : f32 to vector<1x2x8x16xf32>
    %2 = arith.mulf %0, %1 : vector<1x2x8x16xf32>
    %3 = vector.shape_cast %2 : vector<1x2x8x16xf32> to vector<2x8x16xf32>
    %4 = arith.truncf %3 : vector<2x8x16xf32> to vector<2x8x16xbf16>
    %c0_3 = arith.constant 0 : index
    %c0_4 = arith.constant 0 : index
    %c0_5 = arith.constant 0 : index
    %c0_6 = arith.constant 0 : index
    %5 = vector.load %arg3[%c0_3, %c0_4, %c0_5, %c0_6] : memref<1x2x8x16xf32, #tpu.memory_space<vmem>>, vector<1x2x8x16xf32>
    %6 = vector.shape_cast %5 : vector<1x2x8x16xf32> to vector<2x8x16xf32>
    %7 = arith.truncf %6 : vector<2x8x16xf32> to vector<2x8x16xbf16>
    %c0_7 = arith.constant 0 : index
    %c0_8 = arith.constant 0 : index
    %c0_9 = arith.constant 0 : index
    %c0_10 = arith.constant 0 : index
    %8 = vector.load %arg4[%c0_7, %c0_8, %c0_9, %c0_10] : memref<1x2x8x16xf32, #tpu.memory_space<vmem>>, vector<1x2x8x16xf32>
    %9 = vector.shape_cast %8 : vector<1x2x8x16xf32> to vector<2x8x16xf32>
    %10 = arith.truncf %9 : vector<2x8x16xf32> to vector<2x8x16xbf16>
    %cst_11 = arith.constant dense<0.000000e+00> : vector<2x16x16xf32>
    %11 = tpu.matmul %4, %7, %cst_11 {dimension_numbers = #tpu.dot_dimension_numbers<[1], [1], [2], [2], [0, 0, 0, 2, 1, 2], [0], [0]>} : vector<2x8x16xbf16>, vector<2x8x16xbf16>, vector<2x16x16xf32> -> vector<2x16x16xf32>
    %cst_12 = arith.constant dense<0xFF800000> : vector<2x16xf32>
    %12 = vector.multi_reduction <maximumf>, %11, %cst_12 [2] : vector<2x16x16xf32> to vector<2x16xf32>
    %13 = vector.shape_cast %12 : vector<2x16xf32> to vector<2x16x1xf32>
    %14 = vector.broadcast %13 : vector<2x16x1xf32> to vector<2x16x16xf32>
    %15 = arith.subf %11, %14 : vector<2x16x16xf32>
    %16 = math.exp %15 : vector<2x16x16xf32>
    %cst_13 = arith.constant dense<0.000000e+00> : vector<2x16xf32>
    %17 = vector.multi_reduction <add>, %16, %cst_13 [2] : vector<2x16x16xf32> to vector<2x16xf32>
    %18 = vector.shape_cast %17 : vector<2x16xf32> to vector<2x16x1xf32>
    %19 = arith.truncf %16 : vector<2x16x16xf32> to vector<2x16x16xbf16>
    %cst_14 = arith.constant dense<0.000000e+00> : vector<2x8x16xf32>
    %20 = tpu.matmul %10, %19, %cst_14 {dimension_numbers = #tpu.dot_dimension_numbers<[2], [2], [1], [1], [0, 0, 0, 1, 1, 1], [0], [0]>} : vector<2x8x16xbf16>, vector<2x16x16xbf16>, vector<2x8x16xf32> -> vector<2x8x16xf32>
    %21 = tpu.reciprocal %18 {approx = true} : vector<2x16x1xf32> -> vector<2x16x1xf32>
    %22 = tpu.transpose %21, [0, 2, 1] : vector<2x16x1xf32> -> vector<2x1x16xf32>
    %23 = vector.broadcast %22 : vector<2x1x16xf32> to vector<2x8x16xf32>
    %24 = arith.mulf %20, %23 : vector<2x8x16xf32>
    %25 = vector.shape_cast %24 : vector<2x8x16xf32> to vector<1x2x8x16xf32>
    %c0_15 = arith.constant 0 : index
    %c0_16 = arith.constant 0 : index
    %c0_17 = arith.constant 0 : index
    %c0_18 = arith.constant 0 : index
    %26 = vector.load %arg5[%c0_15, %c0_16, %c0_17, %c0_18] : memref<1x2x8x16xf32, #tpu.memory_space<vmem>>, vector<1x2x8x16xf32>
    tpu.vector_store %arg5[%c0_15, %c0_16, %c0_17, %c0_18], %25 {strides = array<i32>} : memref<1x2x8x16xf32, #tpu.memory_space<vmem>>, vector<1x2x8x16xf32>,
    return
  }
  func.func @transform_0(%arg0: i32, %arg1: i32) -> (i32, i32, i32, i32) {
    %c0_i32 = arith.constant 0 : i32
    %c0_i32_0 = arith.constant 0 : i32
    %c0_i32_1 = arith.constant 0 : i32
    return %arg0, %arg1, %c0_i32, %c0_i32_0 : i32, i32, i32, i32
  }
  func.func @transform_1(%arg0: i32, %arg1: i32) -> (i32, i32, i32, i32) {
    %c1_i32 = arith.constant 1 : i32
    %0 = arith.addi %c1_i32, %arg1 : i32
    %c0_i32 = arith.constant 0 : i32
    %c0_i32_0 = arith.constant 0 : i32
    %c0_i32_1 = arith.constant 0 : i32
    return %arg0, %0, %c0_i32, %c0_i32_0 : i32, i32, i32, i32
  }
  func.func @transform_2(%arg0: i32, %arg1: i32) -> (i32, i32, i32, i32) {
    %c2_i32 = arith.constant 2 : i32
    %0 = arith.addi %c2_i32, %arg1 : i32
    %c0_i32 = arith.constant 0 : i32
    %c0_i32_0 = arith.constant 0 : i32
    %c0_i32_1 = arith.constant 0 : i32
    return %arg0, %0, %c0_i32, %c0_i32_0 : i32, i32, i32, i32
  }
  func.func @transform_3(%arg0: i32, %arg1: i32) -> (i32, i32, i32, i32) {
    %c0_i32 = arith.constant 0 : i32
    %c0_i32_0 = arith.constant 0 : i32
    %c0_i32_1 = arith.constant 0 : i32
    return %arg0, %arg1, %c0_i32, %c0_i32_0 : i32, i32, i32, i32
  }
}

</mosaic_0001>

<llo_original>
// kernel: tpu_custom_call.1
$region0: #{tpu_custom_call.1}
  #allocation0 [shape = 'u32[]', space=smem, size = 0x4, offset = 0x4, fixed_abs, tag = 'smem constant byte address 0x4 - core index']
  #allocation1 [shape = 'u32[144,128]{1,0:T(1,128)}', space=vmem, size = 0x12000, scoped, tag = 'internal scratch']
  %s0 = inlined_call_operand.hbm [shape: f32[2,6,8,16], index: 0, kind: input, shape index: {}]
  %s1 = inlined_call_operand.hbm [shape: f32[2,6,8,16], index: 1, kind: input, shape index: {}]
  %s2 = inlined_call_operand.hbm [shape: f32[2,6,8,16], index: 2, kind: input, shape index: {}]
  %s3 = inlined_call_operand.hbm [shape: f32[2,2,8,16], index: 3, kind: output, shape index: {}]
  %s4 = sld [smem:[#allocation0]]
  $region57: #{tpu_custom_call.1} parent=0
    _
  %s6 = ssub.s32 1, %s4
  %s7 = scalar_select 0, %s6, %s4
  $region1: #{tpu_custom_call.1} parent=0
    #allocation2 [shape = 'u8[16384]{0}', space=vmem, size = 0x4000, scoped, tag = 'input window, operand 0']
    #allocation3 [shape = 's32[2]{0}', space=sflag, size = 0x8, scoped, tag = 'scoped memory for tpu_custom_call.1']
    #allocation4 [shape = 's32[2]{0}', space=sflag, size = 0x8, scoped, tag = 'scoped memory for tpu_custom_call.1']
    #allocation5 [shape = 'u8[16384]{0}', space=vmem, size = 0x4000, scoped, tag = 'input window, operand 1']
    #allocation6 [shape = 's32[2]{0}', space=sflag, size = 0x8, scoped, tag = 'scoped memory for tpu_custom_call.1']
    #allocation7 [shape = 'u8[16384]{0}', space=vmem, size = 0x4000, scoped, tag = 'input window, operand 2']
    #allocation8 [shape = 'u8[16384]{0}', space=vmem, size = 0x4000, scoped, tag = 'output window, operand 0']
    %8 = vsyncpa [#allocation3], 0
    %s9 = scalar_lea.sflag [#allocation3], 1
    %10 = vsyncpa %s9, 0
    %11 = vsyncpa [#allocation6], 0
    %s12 = scalar_lea.sflag [#allocation6], 1
    %13 = vsyncpa %s12, 0
    %14 = vsyncpa [#allocation4], 0
    %s15 = scalar_lea.sflag [#allocation4], 1
    %16 = vsyncpa %s15, 0
    loop: start=0, step=1, limit=4
    $region2: #{tpu_custom_call.1} parent=1 // loop_pre_header
      _
    $region3: #{tpu_custom_call.1} parent=1 // loop_header
      %s18 = sphi 0, %s22
      %p19 = scmp.ge.s32.totalorder %s18, 4
      %s25 = sphi 0, %s37
      %s26 = sphi 0, %s33
      %s27 = sphi 0, %s25
      %s28 = sphi 0, %s26
      %s29 = sphi 0, %s27
      %s30 = sphi 0, %s28
      %s42 = sphi 0, %s44
      %s45 = sphi 0, %s42
      %s46 = sphi 0, %s45
      %s62 = sphi 0, %s46
      %s72 = sphi 0, %s74
      %s75 = sphi 0, %s72
      %s76 = sphi 0, %s75
      %s92 = sphi 0, %s76
      %s102 = sphi 0, %s104
      %s105 = sphi 0, %s102
      %s106 = sphi 0, %s105
      %s122 = sphi 0, %s106
      %s130 = sphi 0, %s132
      %s133 = sphi 0, %s130
      %s134 = sphi 0, %s133
      %s150 = sphi 0, %s134
    $region4: #{tpu_custom_call.1} parent=1 // loop_header_branch
      %21 = sbr.rel (%p19) target = $region8
    $region5: #{tpu_custom_call.1} parent=1 // loop_body
      %s23 = ssub.s32 %s18, 1
      %s24 = ssub.s32 %s18, 2
      %s31 = sadd.s32 1, %s26
      %p32 = scmp.ge.s32.totalorder %s31, 1
      %s33 = scalar_select %p32, 0, %s31
      %s34 = sadd.s32 1, %s25
      %s35 = scalar_select %p32, %s34, %s25
      %p36 = scmp.ge.s32.totalorder %s35, 2
      %s37 = scalar_select %p36, 0, %s35
      %s38 = ssub.s32 %s25, %s37
      %s39 = ssub.s32 %s26, %s33
      %s40 = sor.u32 %s38, %s39
      %p41 = scmp.eq.s32.totalorder %s40, 0
      %s43 = sadd.s32 %s42, 1
      %s44 = scalar_select %p41, %s42, %s43
      %p47 = pneg %p41
      %p48 = scmp.eq.s32.totalorder %s18, 1
      %p49 = por %p47, %p48
      %p50 = scmp.ne.s32.totalorder %s42, %s45
      %p51 = scmp.eq.s32.totalorder %s18, 0
      %p52 = por %p50, %p51
      %p53 = scmp.ne.s32.totalorder %s42, %s45
      %p54 = scmp.eq.s32.totalorder %s23, 1
      %p55 = por %p53, %p54
      %p56 = scmp.ne.s32.totalorder %s45, %s46
      %p57 = scmp.eq.s32.totalorder %s23, 0
      %p58 = por %p56, %p57
      %p59 = scmp.ne.s32.totalorder %s45, %s46
      %p60 = scmp.eq.s32.totalorder %s24, 1
      %p61 = por %p59, %p60
      %p63 = scmp.ne.s32.totalorder %s46, %s62
      %p64 = scmp.eq.s32.totalorder %s24, 0
      %p65 = por %p63, %p64
      %s66 = sadd.s32 %s26, 1
      %s67 = sadd.s32 %s33, 1
      %s68 = ssub.s32 %s25, %s37
      %s69 = ssub.s32 %s66, %s67
      %s70 = sor.u32 %s68, %s69
      %p71 = scmp.eq.s32.totalorder %s70, 0
      %s73 = sadd.s32 %s72, 1
      %s74 = scalar_select %p71, %s72, %s73
      %p77 = pneg %p71
      %p78 = scmp.eq.s32.totalorder %s18, 1
      %p79 = por %p77, %p78
      %p80 = scmp.ne.s32.totalorder %s72, %s75
      %p81 = scmp.eq.s32.totalorder %s18, 0
      %p82 = por %p80, %p81
      %p83 = scmp.ne.s32.totalorder %s72, %s75
      %p84 = scmp.eq.s32.totalorder %s23, 1
      %p85 = por %p83, %p84
      %p86 = scmp.ne.s32.totalorder %s75, %s76
      %p87 = scmp.eq.s32.totalorder %s23, 0
      %p88 = por %p86, %p87
      %p89 = scmp.ne.s32.totalorder %s75, %s76
      %p90 = scmp.eq.s32.totalorder %s24, 1
      %p91 = por %p89, %p90
      %p93 = scmp.ne.s32.totalorder %s76, %s92
      %p94 = scmp.eq.s32.totalorder %s24, 0
      %p95 = por %p93, %p94
      %s96 = sadd.s32 %s26, 2
      %s97 = sadd.s32 %s33, 2
      %s98 = ssub.s32 %s25, %s37
      %s99 = ssub.s32 %s96, %s97
      %s100 = sor.u32 %s98, %s99
      %p101 = scmp.eq.s32.totalorder %s100, 0
      %s103 = sadd.s32 %s102, 1
      %s104 = scalar_select %p101, %s102, %s103
      %p107 = pneg %p101
      %p108 = scmp.eq.s32.totalorder %s18, 1
      %p109 = por %p107, %p108
      %p110 = scmp.ne.s32.totalorder %s102, %s105
      %p111 = scmp.eq.s32.totalorder %s18, 0
      %p112 = por %p110, %p111
      %p113 = scmp.ne.s32.totalorder %s102, %s105
      %p114 = scmp.eq.s32.totalorder %s23, 1
      %p115 = por %p113, %p114
      %p116 = scmp.ne.s32.totalorder %s105, %s106
      %p117 = scmp.eq.s32.totalorder %s23, 0
      %p118 = por %p116, %p117
      %p119 = scmp.ne.s32.totalorder %s105, %s106
      %p120 = scmp.eq.s32.totalorder %s24, 1
      %p121 = por %p119, %p120
      %p123 = scmp.ne.s32.totalorder %s106, %s122
      %p124 = scmp.eq.s32.totalorder %s24, 0
      %p125 = por %p123, %p124
      %s126 = ssub.s32 %s25, %s37
      %s127 = ssub.s32 %s26, %s33
      %s128 = sor.u32 %s126, %s127
      %p129 = scmp.eq.s32.totalorder %s128, 0
      %s131 = sadd.s32 %s130, 1
      %s132 = scalar_select %p129, %s130, %s131
      %p135 = pneg %p129
      %p136 = scmp.eq.s32.totalorder %s18, 1
      %p137 = por %p135, %p136
      %p138 = scmp.ne.s32.totalorder %s130, %s133
      %p139 = scmp.eq.s32.totalorder %s18, 0
      %p140 = por %p138, %p139
      %p141 = scmp.ne.s32.totalorder %s130, %s133
      %p142 = scmp.eq.s32.totalorder %s23, 1
      %p143 = por %p141, %p142
      %p144 = scmp.ne.s32.totalorder %s133, %s134
      %p145 = scmp.eq.s32.totalorder %s23, 0
      %p146 = por %p144, %p145
      %p147 = scmp.ne.s32.totalorder %s133, %s134
      %p148 = scmp.eq.s32.totalorder %s24, 1
      %p149 = por %p147, %p148
      %p151 = scmp.ne.s32.totalorder %s134, %s150
      %p152 = scmp.eq.s32.totalorder %s24, 0
      %p153 = por %p151, %p152
      %p154 = scmp.le.s32.totalorder 1, %s18
      %p155 = scmp.lt.s32.totalorder %s18, 3
      %p156 = pnand %p154, %p155
      %p157 = pneg %p156
      // Predicated region
      $region9: #{tpu_custom_call.1} parent=5 // pred_check
        _
      $region10: #{tpu_custom_call.1} parent=5 // pred_check_branch
        %159 = sbr.rel (%p156) target = $region12
      $region11: #{tpu_custom_call.1} parent=5 // pred_region
        %s160 = ssub.s32 %s18, 1
      $region12: #{tpu_custom_call.1} parent=5 // pred_fallthru
        _
      %p161 = scmp.lt.s32.totalorder %s18, 2
      // Predicated region
      $region13: #{tpu_custom_call.1} parent=5 // pred_check
        %p162 = pneg %p161
      $region14: #{tpu_custom_call.1} parent=5 // pred_check_branch
        %164 = sbr.rel (%p162) target = $region16
      $region15: #{tpu_custom_call.1} parent=5 // pred_region
        // Predicated region
        $region17: #{tpu_custom_call.1} parent=15 // pred_check
          %p165 = pneg %p52
        $region18: #{tpu_custom_call.1} parent=15 // pred_check_branch
          %167 = sbr.rel (%p165) target = $region20
        $region19: #{tpu_custom_call.1} parent=15 // pred_region
          %s168 = sand.u32 %s42, 1
          %s169 = scalar_lea.sflag [#allocation3], %s168
          %s170 = sand.u32 %s42, 1
          %s171 = smul.addr %s170, 16
          %s172 = scalar_lea.vmem [#allocation2], %s171
          %s173 = smul.u32 2, %s26
          %s175 = ssub.s32 256, 256
          %176 = vsyncadd %s169, %s175
          %s177 = smul.addr %s25, 6
          %s178 = sadd.s32 %s173, %s177
          %s179 = smul.addr %s178, 128
          %s180 = scalar_lea.hbm %s0, %s179
          %s181 = sshll.u32 %s172, 4
          %s182 = int_to_ptr.vmem [resolvable:$true] %s181
          %187 = dma.hbm_to_vmem [thread:$0]  %s180, 256, %s182, %s169, 128, 128, 8
        $region20: #{tpu_custom_call.1} parent=15 // pred_fallthru
          _
        // Predicated region
        $region21: #{tpu_custom_call.1} parent=15 // pred_check
          %p188 = pneg %p82
        $region22: #{tpu_custom_call.1} parent=15 // pred_check_branch
          %190 = sbr.rel (%p188) target = $region24
        $region23: #{tpu_custom_call.1} parent=15 // pred_region
          %s191 = sand.u32 %s18, 1
          %s192 = scalar_lea.sflag [#allocation6], %s191
          %s193 = sand.u32 %s72, 1
          %s194 = smul.addr %s193, 16
          %s195 = scalar_lea.vmem [#allocation5], %s194
          %s196 = sadd.s32 %s26, 1
          %s197 = smul.u32 2, %s196
          %s199 = ssub.s32 256, 256
          %200 = vsyncadd %s192, %s199
          %s201 = smul.addr %s25, 6
          %s202 = sadd.s32 %s197, %s201
          %s203 = smul.addr %s202, 128
          %s204 = scalar_lea.hbm %s1, %s203
          %s205 = sshll.u32 %s195, 4
          %s206 = int_to_ptr.vmem [resolvable:$true] %s205
          %211 = dma.hbm_to_vmem [thread:$0]  %s204, 256, %s206, %s192, 128, 128, 8
        $region24: #{tpu_custom_call.1} parent=15 // pred_fallthru
          _
        // Predicated region
        $region25: #{tpu_custom_call.1} parent=15 // pred_check
          %p212 = pneg %p112
        $region26: #{tpu_custom_call.1} parent=15 // pred_check_branch
          %214 = sbr.rel (%p212) target = $region28
        $region27: #{tpu_custom_call.1} parent=15 // pred_region
          %s215 = sand.u32 %s18, 1
          %s216 = scalar_lea.sflag [#allocation6], %s215
          %s217 = sand.u32 %s102, 1
          %s218 = smul.addr %s217, 16
          %s219 = scalar_lea.vmem [#allocation7], %s218
          %s220 = sadd.s32 %s26, 2
          %s221 = smul.u32 2, %s220
          %s223 = ssub.s32 256, 256
          %224 = vsyncadd %s216, %s223
          %s225 = smul.addr %s25, 6
          %s226 = sadd.s32 %s221, %s225
          %s227 = smul.addr %s226, 128
          %s228 = scalar_lea.hbm %s2, %s227
          %s229 = sshll.u32 %s219, 4
          %s230 = int_to_ptr.vmem [resolvable:$true] %s229
          %235 = dma.hbm_to_vmem [thread:$0]  %s228, 256, %s230, %s216, 128, 128, 8
        $region28: #{tpu_custom_call.1} parent=15 // pred_fallthru
          _
      $region16: #{tpu_custom_call.1} parent=5 // pred_fallthru
        _
      %p236 = scmp.le.s32.totalorder 1, %s18
      %p237 = scmp.lt.s32.totalorder %s18, 3
      %p238 = pnand %p236, %p237
      %p239 = pneg %p238
      // Predicated region
      $region29: #{tpu_custom_call.1} parent=5 // pred_check
        _
      $region30: #{tpu_custom_call.1} parent=5 // pred_check_branch
        %241 = sbr.rel (%p238) target = $region32
      $region31: #{tpu_custom_call.1} parent=5 // pred_region
        %s242 = ssub.s32 %s18, 1
        %s243 = sand.u32 %s45, 1
        %s244 = scalar_lea.sflag [#allocation3], %s243
        %s245 = sand.u32 %s45, 1
        %s246 = smul.addr %s245, 16
        %s247 = scalar_lea.vmem [#allocation2], %s246
        // Predicated region
        $region33: #{tpu_custom_call.1} parent=31 // pred_check
          %p248 = pneg %p58
        $region34: #{tpu_custom_call.1} parent=31 // pred_check_branch
          %250 = sbr.rel (%p248) target = $region36
        $region35: #{tpu_custom_call.1} parent=31 // pred_region
          %251 = dma.done %s244, 256
        $region36: #{tpu_custom_call.1} parent=31 // pred_fallthru
          _
        %s252 = sand.u32 %s23, 1
        %s253 = scalar_lea.sflag [#allocation6], %s252
        %s254 = sand.u32 %s75, 1
        %s255 = smul.addr %s254, 16
        %s256 = scalar_lea.vmem [#allocation5], %s255
        // Predicated region
        $region37: #{tpu_custom_call.1} parent=31 // pred_check
          %p257 = pneg %p88
        $region38: #{tpu_custom_call.1} parent=31 // pred_check_branch
          %259 = sbr.rel (%p257) target = $region40
        $region39: #{tpu_custom_call.1} parent=31 // pred_region
          %260 = dma.done %s253, 256
        $region40: #{tpu_custom_call.1} parent=31 // pred_fallthru
          _
        %s261 = sand.u32 %s23, 1
        %s262 = scalar_lea.sflag [#allocation6], %s261
        %s263 = sand.u32 %s105, 1
        %s264 = smul.addr %s263, 16
        %s265 = scalar_lea.vmem [#allocation7], %s264
        // Predicated region
        $region41: #{tpu_custom_call.1} parent=31 // pred_check
          %p266 = pneg %p118
        $region42: #{tpu_custom_call.1} parent=31 // pred_check_branch
          %268 = sbr.rel (%p266) target = $region44
        $region43: #{tpu_custom_call.1} parent=31 // pred_region
          %269 = dma.done %s262, 256
        $region44: #{tpu_custom_call.1} parent=31 // pred_fallthru
          _
        %s270 = sand.u32 %s45, 1
        %s271 = scalar_lea.sflag [#allocation3], %s270
        %s272 = sand.u32 %s45, 1
        %s273 = smul.addr %s272, 16
        %s274 = scalar_lea.vmem [#allocation2], %s273
        %p275 = pneg %p58
        %p276 = pneg %p55
        %s277 = sand.u32 %s23, 1
        %s278 = scalar_lea.sflag [#allocation6], %s277
        %s279 = sand.u32 %s75, 1
        %s280 = smul.addr %s279, 16
        %s281 = scalar_lea.vmem [#allocation5], %s280
        %p282 = pneg %p88
        %p283 = pneg %p85
        %s284 = sand.u32 %s23, 1
        %s285 = scalar_lea.sflag [#allocation6], %s284
        %s286 = sand.u32 %s105, 1
        %s287 = smul.addr %s286, 16
        %s288 = scalar_lea.vmem [#allocation7], %s287
        %p289 = pneg %p118
        %p290 = pneg %p115
        %p291 = pneg %p146
        %p292 = pneg %p143
        %s293 = sand.u32 %s133, 1
        %s294 = scalar_lea.sflag [#allocation4], %s293
        %s295 = sand.u32 %s133, 1
        %s296 = smul.addr %s295, 16
        %s297 = scalar_lea.vmem [#allocation8], %s296
        %s298 = smul.u32 2, %s28
        %s299 = sadd.s32 %s28, 1
        %s300 = smul.u32 2, %s299
        %s301 = sadd.s32 %s28, 2
        %s302 = smul.u32 2, %s301
        %s303 = smul.u32 2, %s28
        %v305 = vld [vmem:[%s247] sm:$0xff]
        %v306 = vld [vmem:[%s247 + $0x8] sm:$0xff]
        %v307 = vmul.f32 %v305, 0.35355338
        %v308 = vmul.f32 %v306, 0.35355338
        %v309 = vpack.c.bf16 %v307, %v307
        %v310 = vpack.c.bf16 %v308, %v308
        %v311 = vld [vmem:[%s256] sm:$0xff]
        %v312 = vld [vmem:[%s256 + $0x8] sm:$0xff]
        %v313 = vpack.c.bf16 %v311, %v311
        %v314 = vpack.c.bf16 %v312, %v312
        %v315 = vld [vmem:[%s265] sm:$0xff]
        %v316 = vld [vmem:[%s265 + $0x8] sm:$0xff]
        %v317 = vpack.c.bf16 %v315, %v315
        %v318 = vpack.c.bf16 %v316, %v316
        %319 = vxpose.xlu0.c.b16.start [1/8] %v309, 128
        %320 = vxpose.xlu0.c.b16.cont [2/8] 0, 128
        %321 = vxpose.xlu0.c.b16.cont [3/8] 0, 128
        %322 = vxpose.xlu0.c.b16.cont [4/8] 0, 128
        %323 = vxpose.xlu0.c.b16.cont [5/8] 0, 128
        %324 = vxpose.xlu0.c.b16.cont [6/8] 0, 128
        %325 = vxpose.xlu0.c.b16.cont [7/8] 0, 128
        %326 = vxpose.xlu0.c.b16.end [8/8] 0, 128
        %v327 = vpop.trf.xlu0
        %v328 = vpop.trf.xlu0
        %v329 = vpop.trf.xlu0
        %v330 = vpop.trf.xlu0
        %v331 = vpop.trf.xlu0
        %v332 = vpop.trf.xlu0
        %v333 = vpop.trf.xlu0
        %v334 = vpop.trf.xlu0
        %vm335 = vcmask 64512
        %v337 = vsel %vm335, %v327, 0
        %vm339 = vcmask 1043456
        %v341 = vsel %vm339, %v313, 0
        %343 = vmatprep.subr.bf16.mxu0 0
        %344 = vmatpush1.bf16.msra.mxu0 %v341
        %345 = vmatprep.subr.bf16.mxu0 0
        %346 = vmatpush1.bf16.msra.mxu0 0
        %347 = vmatprep.subr.bf16.mxu0 0
        %348 = vmatpush1.bf16.msra.mxu0 0
        %349 = vmatprep.subr.bf16.mxu0 0
        %350 = vmatpush1.bf16.msra.mxu0 0
        %351 = vmatprep.subr.bf16.mxu0 0
        %352 = vmatpush1.bf16.msra.mxu0 0
        %353 = vmatprep.subr.bf16.mxu0 0
        %354 = vmatpush1.bf16.msra.mxu0 0
        %355 = vmatprep.subr.bf16.mxu0 0
        %356 = vmatpush1.bf16.msra.mxu0 0
        %357 = vmatprep.subr.bf16.mxu0 0
        %358 = vmatpush1.bf16.msra.mxu0 0
        %359 = vmatprep.subr.bf16.mxu0 0
        %360 = vmatpush1.bf16.msra.mxu0 0
        %361 = vmatprep.subr.bf16.mxu0 0
        %362 = vmatpush1.bf16.msra.mxu0 0
        %363 = vmatprep.subr.bf16.mxu0 0
        %364 = vmatpush1.bf16.msra.mxu0 0
        %365 = vmatprep.subr.bf16.mxu0 0
        %366 = vmatpush1.bf16.msra.mxu0 0
        %367 = vmatprep.subr.bf16.mxu0 0
        %368 = vmatpush1.bf16.msra.mxu0 0
        %369 = vmatprep.subr.bf16.mxu0 0
        %370 = vmatpush1.bf16.msra.mxu0 0
        %371 = vmatprep.subr.bf16.mxu0 0
        %372 = vmatpush1.bf16.msra.mxu0 0
        %373 = vmatprep.subr.bf16.mxu0 0
        %374 = vmatpush1.bf16.msra.mxu0 0
        %375 = vmatprep.mubr.bf16.mxu0 0
        %376 = vmatmul.mubr.bf16.gmra.mrb[0].mxu0 %v337
        %v377 = vpop.f32.mrb[0].mxu0
        %v378 = vadd.f32 0.0, %v377
        %v379 = vpop.f32.mrb[0].mxu0
        %v380 = vpop.f32.mrb[0].mxu0
        %v381 = vadd.f32 0.0, %v380
        %v382 = vpop.f32.mrb[0].mxu0
        %383 = vdwg.mxu0
        %384 = vxpose.xlu0.c.b16.start [1/8] %v310, 128
        %385 = vxpose.xlu0.c.b16.cont [2/8] 0, 128
        %386 = vxpose.xlu0.c.b16.cont [3/8] 0, 128
        %387 = vxpose.xlu0.c.b16.cont [4/8] 0, 128
        %388 = vxpose.xlu0.c.b16.cont [5/8] 0, 128
        %389 = vxpose.xlu0.c.b16.cont [6/8] 0, 128
        %390 = vxpose.xlu0.c.b16.cont [7/8] 0, 128
        %391 = vxpose.xlu0.c.b16.end [8/8] 0, 128
        %v392 = vpop.trf.xlu0
        %v393 = vpop.trf.xlu0
        %v394 = vpop.trf.xlu0
        %v395 = vpop.trf.xlu0
        %v396 = vpop.trf.xlu0
        %v397 = vpop.trf.xlu0
        %v398 = vpop.trf.xlu0
        %v399 = vpop.trf.xlu0
        %v401 = vsel %vm335, %v392, 0
        %v404 = vsel %vm339, %v314, 0
        %406 = vmatprep.subr.bf16.mxu0 0
        %407 = vmatpush1.bf16.msra.mxu0 %v404
        %408 = vmatprep.subr.bf16.mxu0 0
        %409 = vmatpush1.bf16.msra.mxu0 0
        %410 = vmatprep.subr.bf16.mxu0 0
        %411 = vmatpush1.bf16.msra.mxu0 0
        %412 = vmatprep.subr.bf16.mxu0 0
        %413 = vmatpush1.bf16.msra.mxu0 0
        %414 = vmatprep.subr.bf16.mxu0 0
        %415 = vmatpush1.bf16.msra.mxu0 0
        %416 = vmatprep.subr.bf16.mxu0 0
        %417 = vmatpush1.bf16.msra.mxu0 0
        %418 = vmatprep.subr.bf16.mxu0 0
        %419 = vmatpush1.bf16.msra.mxu0 0
        %420 = vmatprep.subr.bf16.mxu0 0
        %421 = vmatpush1.bf16.msra.mxu0 0
        %422 = vmatprep.subr.bf16.mxu0 0
        %423 = vmatpush1.bf16.msra.mxu0 0
        %424 = vmatprep.subr.bf16.mxu0 0
        %425 = vmatpush1.bf16.msra.mxu0 0
        %426 = vmatprep.subr.bf16.mxu0 0
        %427 = vmatpush1.bf16.msra.mxu0 0
        %428 = vmatprep.subr.bf16.mxu0 0
        %429 = vmatpush1.bf16.msra.mxu0 0
        %430 = vmatprep.subr.bf16.mxu0 0
        %431 = vmatpush1.bf16.msra.mxu0 0
        %432 = vmatprep.subr.bf16.mxu0 0
        %433 = vmatpush1.bf16.msra.mxu0 0
        %434 = vmatprep.subr.bf16.mxu0 0
        %435 = vmatpush1.bf16.msra.mxu0 0
        %436 = vmatprep.subr.bf16.mxu0 0
        %437 = vmatpush1.bf16.msra.mxu0 0
        %438 = vmatprep.mubr.bf16.mxu0 0
        %439 = vmatmul.mubr.bf16.gmra.mrb[0].mxu0 %v401
        %v440 = vpop.f32.mrb[0].mxu0
        %v441 = vadd.f32 0.0, %v440
        %v442 = vpop.f32.mrb[0].mxu0
        %v443 = vpop.f32.mrb[0].mxu0
        %v444 = vadd.f32 0.0, %v443
        %v445 = vpop.f32.mrb[0].mxu0
        %446 = vdwg.mxu0
        %vm447 = vcmask 130048
        %v448 = vsel %vm447, %v378, -inf
        %449 = vmax.xlane.f32.xlu0 %v448
        %v450 = vpop.xlane.xlu0 %449
        %v451 = vsel %vm447, %v381, -inf
        %452 = vmax.xlane.f32.xlu0 %v451
        %v453 = vpop.xlane.xlu0 %452
        %v454 = vsel %vm447, %v441, -inf
        %455 = vmax.xlane.f32.xlu0 %v454
        %v456 = vpop.xlane.xlu0 %455
        %v457 = vsel %vm447, %v444, -inf
        %458 = vmax.xlane.f32.xlu0 %v457
        %v459 = vpop.xlane.xlu0 %458
        %v460 = vsub.f32 %v378, %v450
        %v461 = vsub.f32 %v381, %v453
        %v462 = vsub.f32 %v441, %v456
        %v463 = vsub.f32 %v444, %v459
        %v464 = vmul.f32 %v460, 1.442695
        %v465 = vpow.pop %v464
        %v466 = vmul.f32 %v461, 1.442695
        %v467 = vpow.pop %v466
        %v468 = vmul.f32 %v462, 1.442695
        %v469 = vpow.pop %v468
        %v470 = vmul.f32 %v463, 1.442695
        %v471 = vpow.pop %v470
        %v472 = vsel %vm447, %v465, 0.0
        %473 = vadd.xlane.f32.xlu0 %v472
        %v474 = vpop.xlane.xlu0 %473
        %v475 = vsel %vm447, %v467, 0.0
        %476 = vadd.xlane.f32.xlu0 %v475
        %v477 = vpop.xlane.xlu0 %476
        %v478 = vsel %vm447, %v469, 0.0
        %479 = vadd.xlane.f32.xlu0 %v478
        %v480 = vpop.xlane.xlu0 %479
        %v481 = vsel %vm447, %v471, 0.0
        %482 = vadd.xlane.f32.xlu0 %v481
        %v483 = vpop.xlane.xlu0 %482
        %v484 = vpack.c.bf16 %v467, %v465
        %v485 = vpack.c.bf16 %v471, %v469
        %v487 = vsel %vm447, %v317, 0
        %v490 = vsel %vm447, %v484, 0
        %492 = vmatprep.subr.bf16.mxu0 0
        %493 = vmatpush1.bf16.xpose.msra.mxu0 %v490
        %494 = vmatprep.subr.bf16.mxu0 0
        %495 = vmatpush1.bf16.xpose.msra.mxu0 0
        %496 = vmatprep.subr.bf16.mxu0 0
        %497 = vmatpush1.bf16.xpose.msra.mxu0 0
        %498 = vmatprep.subr.bf16.mxu0 0
        %499 = vmatpush1.bf16.xpose.msra.mxu0 0
        %500 = vmatprep.subr.bf16.mxu0 0
        %501 = vmatpush1.bf16.xpose.msra.mxu0 0
        %502 = vmatprep.subr.bf16.mxu0 0
        %503 = vmatpush1.bf16.xpose.msra.mxu0 0
        %504 = vmatprep.subr.bf16.mxu0 0
        %505 = vmatpush1.bf16.xpose.msra.mxu0 0
        %506 = vmatprep.subr.bf16.mxu0 0
        %507 = vmatpush1.bf16.xpose.msra.mxu0 0
        %508 = vmatprep.subr.bf16.mxu0 0
        %509 = vmatpush1.bf16.xpose.msra.mxu0 0
        %510 = vmatprep.subr.bf16.mxu0 0
        %511 = vmatpush1.bf16.xpose.msra.mxu0 0
        %512 = vmatprep.subr.bf16.mxu0 0
        %513 = vmatpush1.bf16.xpose.msra.mxu0 0
        %514 = vmatprep.subr.bf16.mxu0 0
        %515 = vmatpush1.bf16.xpose.msra.mxu0 0
        %516 = vmatprep.subr.bf16.mxu0 0
        %517 = vmatpush1.bf16.xpose.msra.mxu0 0
        %518 = vmatprep.subr.bf16.mxu0 0
        %519 = vmatpush1.bf16.xpose.msra.mxu0 0
        %520 = vmatprep.subr.bf16.mxu0 0
        %521 = vmatpush1.bf16.xpose.msra.mxu0 0
        %522 = vmatprep.subr.bf16.mxu0 0
        %523 = vmatpush1.bf16.xpose.msra.mxu0 0
        %524 = vmatprep.mubr.bf16.mxu0 0
        %525 = vmatmul.mubr.bf16.gmra.mrb[0].mxu0 %v487
        %v526 = vpop.f32.mrb[0].mxu0
        %v527 = vadd.f32 0.0, %v526
        %v528 = vpop.f32.mrb[0].mxu0
        %v529 = vpop.f32.mrb[0].mxu0
        %v530 = vpop.f32.mrb[0].mxu0
        %531 = vdwg.mxu0
        %v533 = vsel %vm447, %v318, 0
        %v536 = vsel %vm447, %v485, 0
        %538 = vmatprep.subr.bf16.mxu0 0
        %539 = vmatpush1.bf16.xpose.msra.mxu0 %v536
        %540 = vmatprep.subr.bf16.mxu0 0
        %541 = vmatpush1.bf16.xpose.msra.mxu0 0
        %542 = vmatprep.subr.bf16.mxu0 0
        %543 = vmatpush1.bf16.xpose.msra.mxu0 0
        %544 = vmatprep.subr.bf16.mxu0 0
        %545 = vmatpush1.bf16.xpose.msra.mxu0 0
        %546 = vmatprep.subr.bf16.mxu0 0
        %547 = vmatpush1.bf16.xpose.msra.mxu0 0
        %548 = vmatprep.subr.bf16.mxu0 0
        %549 = vmatpush1.bf16.xpose.msra.mxu0 0
        %550 = vmatprep.subr.bf16.mxu0 0
        %551 = vmatpush1.bf16.xpose.msra.mxu0 0
        %552 = vmatprep.subr.bf16.mxu0 0
        %553 = vmatpush1.bf16.xpose.msra.mxu0 0
        %554 = vmatprep.subr.bf16.mxu0 0
        %555 = vmatpush1.bf16.xpose.msra.mxu0 0
        %556 = vmatprep.subr.bf16.mxu0 0
        %557 = vmatpush1.bf16.xpose.msra.mxu0 0
        %558 = vmatprep.subr.bf16.mxu0 0
        %559 = vmatpush1.bf16.xpose.msra.mxu0 0
        %560 = vmatprep.subr.bf16.mxu0 0
        %561 = vmatpush1.bf16.xpose.msra.mxu0 0
        %562 = vmatprep.subr.bf16.mxu0 0
        %563 = vmatpush1.bf16.xpose.msra.mxu0 0
        %564 = vmatprep.subr.bf16.mxu0 0
        %565 = vmatpush1.bf16.xpose.msra.mxu0 0
        %566 = vmatprep.subr.bf16.mxu0 0
        %567 = vmatpush1.bf16.xpose.msra.mxu0 0
        %568 = vmatprep.subr.bf16.mxu0 0
        %569 = vmatpush1.bf16.xpose.msra.mxu0 0
        %570 = vmatprep.mubr.bf16.mxu0 0
        %571 = vmatmul.mubr.bf16.gmra.mrb[0].mxu0 %v533
        %v572 = vpop.f32.mrb[0].mxu0
        %v573 = vadd.f32 0.0, %v572
        %v574 = vpop.f32.mrb[0].mxu0
        %v575 = vpop.f32.mrb[0].mxu0
        %v576 = vpop.f32.mrb[0].mxu0
        %577 = vdwg.mxu0
        %v578 = vrcp.pop %v474
        %v579 = vrcp.pop %v477
        %v580 = vrcp.pop %v480
        %v581 = vrcp.pop %v483
        %582 = vxpose.xlu0.b32.start [1/16] %v578, 128
        %583 = vxpose.xlu0.b32.cont [2/16] %v579, 128
        %584 = vxpose.xlu0.b32.cont [3/16] 0.0, 128
        %585 = vxpose.xlu0.b32.cont [4/16] 0.0, 128
        %586 = vxpose.xlu0.b32.cont [5/16] 0.0, 128
        %587 = vxpose.xlu0.b32.cont [6/16] 0.0, 128
        %588 = vxpose.xlu0.b32.cont [7/16] 0.0, 128
        %589 = vxpose.xlu0.b32.cont [8/16] 0.0, 128
        %590 = vxpose.xlu0.b32.cont [9/16] 0.0, 128
        %591 = vxpose.xlu0.b32.cont [10/16] 0.0, 128
        %592 = vxpose.xlu0.b32.cont [11/16] 0.0, 128
        %593 = vxpose.xlu0.b32.cont [12/16] 0.0, 128
        %594 = vxpose.xlu0.b32.cont [13/16] 0.0, 128
        %595 = vxpose.xlu0.b32.cont [14/16] 0.0, 128
        %596 = vxpose.xlu0.b32.cont [15/16] 0.0, 128
        %597 = vxpose.xlu0.b32.end [16/16] 0.0, 128
        %v598 = vpop.trf.xlu0
        %v599 = vpop.trf.xlu0
        %v600 = vpop.trf.xlu0
        %v601 = vpop.trf.xlu0
        %v602 = vpop.trf.xlu0
        %v603 = vpop.trf.xlu0
        %v604 = vpop.trf.xlu0
        %v605 = vpop.trf.xlu0
        %v606 = vpop.trf.xlu0
        %v607 = vpop.trf.xlu0
        %v608 = vpop.trf.xlu0
        %v609 = vpop.trf.xlu0
        %v610 = vpop.trf.xlu0
        %v611 = vpop.trf.xlu0
        %v612 = vpop.trf.xlu0
        %v613 = vpop.trf.xlu0
        %614 = vxpose.xlu0.b32.start [1/16] %v580, 128
        %615 = vxpose.xlu0.b32.cont [2/16] %v581, 128
        %616 = vxpose.xlu0.b32.cont [3/16] 0.0, 128
        %617 = vxpose.xlu0.b32.cont [4/16] 0.0, 128
        %618 = vxpose.xlu0.b32.cont [5/16] 0.0, 128
        %619 = vxpose.xlu0.b32.cont [6/16] 0.0, 128
        %620 = vxpose.xlu0.b32.cont [7/16] 0.0, 128
        %621 = vxpose.xlu0.b32.cont [8/16] 0.0, 128
        %622 = vxpose.xlu0.b32.cont [9/16] 0.0, 128
        %623 = vxpose.xlu0.b32.cont [10/16] 0.0, 128
        %624 = vxpose.xlu0.b32.cont [11/16] 0.0, 128
        %625 = vxpose.xlu0.b32.cont [12/16] 0.0, 128
        %626 = vxpose.xlu0.b32.cont [13/16] 0.0, 128
        %627 = vxpose.xlu0.b32.cont [14/16] 0.0, 128
        %628 = vxpose.xlu0.b32.cont [15/16] 0.0, 128
        %629 = vxpose.xlu0.b32.end [16/16] 0.0, 128
        %v630 = vpop.trf.xlu0
        %v631 = vpop.trf.xlu0
        %v632 = vpop.trf.xlu0
        %v633 = vpop.trf.xlu0
        %v634 = vpop.trf.xlu0
        %v635 = vpop.trf.xlu0
        %v636 = vpop.trf.xlu0
        %v637 = vpop.trf.xlu0
        %v638 = vpop.trf.xlu0
        %v639 = vpop.trf.xlu0
        %v640 = vpop.trf.xlu0
        %v641 = vpop.trf.xlu0
        %v642 = vpop.trf.xlu0
        %v643 = vpop.trf.xlu0
        %v644 = vpop.trf.xlu0
        %v645 = vpop.trf.xlu0
        %v646 = vlaneseq
        %v647 = vshrl.u32 %v646, 7
        %v648 = vsub.s32 0, %v647
        %v649 = vrot.slane %v598, %v648
        %v650 = vlaneseq
        %v651 = vshrl.u32 %v650, 7
        %v652 = vsub.s32 0, %v651
        %v653 = vrot.slane %v630, %v652
        %v654 = vmul.f32 %v527, %v649
        %v655 = vmul.f32 %v573, %v653
        %656 = vst.msk [vmem:[%s297] sm:$0xff] %vm447, %v654
        %657 = vst.msk [vmem:[%s297 + $0x8] sm:$0xff] %vm447, %v655
        %s658 = sand.u32 %s133, 1
        %s659 = scalar_lea.sflag [#allocation4], %s658
        %s660 = sand.u32 %s133, 1
        %s661 = smul.addr %s660, 16
        %s662 = scalar_lea.vmem [#allocation8], %s661
        // Predicated region
        $region45: #{tpu_custom_call.1} parent=31 // pred_check
          %p663 = pneg %p143
        $region46: #{tpu_custom_call.1} parent=31 // pred_check_branch
          %665 = sbr.rel (%p663) target = $region48
        $region47: #{tpu_custom_call.1} parent=31 // pred_region
          %s666 = smul.u32 2, %s28
          %s668 = ssub.s32 256, 256
          %669 = vsyncadd %s659, %s668
          %s670 = smul.addr %s27, 2
          %s671 = sadd.s32 %s666, %s670
          %s672 = smul.addr %s671, 128
          %s673 = scalar_lea.hbm %s3, %s672
          %s674 = sshll.u32 %s662, 4
          %s675 = int_to_ptr.vmem [resolvable:$true] %s674
          %680 = dma.vmem_to_hbm [thread:$0]  %s675, 256, %s673, %s659, 128, 128, 8
        $region48: #{tpu_custom_call.1} parent=31 // pred_fallthru
          _
      $region32: #{tpu_custom_call.1} parent=5 // pred_fallthru
        _
      %p681 = scmp.le.s32.totalorder 2, %s18
      // Predicated region
      $region49: #{tpu_custom_call.1} parent=5 // pred_check
        %p682 = pneg %p681
      $region50: #{tpu_custom_call.1} parent=5 // pred_check_branch
        %684 = sbr.rel (%p682) target = $region52
      $region51: #{tpu_custom_call.1} parent=5 // pred_region
        %s685 = ssub.s32 %s18, 2
        // Predicated region
        $region53: #{tpu_custom_call.1} parent=51 // pred_check
          %p686 = pneg %p149
        $region54: #{tpu_custom_call.1} parent=51 // pred_check_branch
          %688 = sbr.rel (%p686) target = $region56
        $region55: #{tpu_custom_call.1} parent=51 // pred_region
          %s689 = sand.u32 %s134, 1
          %s690 = scalar_lea.sflag [#allocation4], %s689
          %s691 = sand.u32 %s134, 1
          %s692 = smul.addr %s691, 16
          %s693 = scalar_lea.vmem [#allocation8], %s692
          %694 = dma.done %s690, 256
        $region56: #{tpu_custom_call.1} parent=51 // pred_fallthru
          _
      $region52: #{tpu_custom_call.1} parent=5 // pred_fallthru
        _
    $region6: #{tpu_custom_call.1} parent=1 // loop_footer
      %s22 = sadd.s32 1, %s18
    $region7: #{tpu_custom_call.1} parent=1 // loop_footer_branch
      %17 = sbr.rel target = $region3
    $region8: #{tpu_custom_call.1} parent=1 // loop_exit
      _
    %695 = vsyncpa [#allocation3], 1
    %s696 = scalar_lea.sflag [#allocation3], 1
    %697 = vsyncpa %s696, 1
    %698 = vsyncpa [#allocation6], 1
    %s699 = scalar_lea.sflag [#allocation6], 1
    %700 = vsyncpa %s699, 1
    %701 = vsyncpa [#allocation4], 1
    %s702 = scalar_lea.sflag [#allocation4], 1
    %703 = vsyncpa %s702, 1

</llo_original>
